<compile_context>
chip_gen: v5e
topology: v5e:2x2
jax: 0.10.0
libtpu: 0.0.40
codegen_flags: <defaults>
</compile_context>

<pallas_src>
from functools import partial

import jax
import jax.numpy as jnp
from jax import lax
from jax.experimental import pallas as pl
from jax.experimental.pallas import tpu as pltpu


def _attention_head_kernel(x_ref, w_ref, b_ref, pooled_ref, att_ref, cls_ref,
                           *, c_out, c_out_pad, activation, matmul_dtype,
                           approx_reciprocal):
    # x_ref:      (Bb, C_in, T)        float32 (cast to matmul dtype in-kernel)
    # w_ref:      (2*C_out_pad, C_in)  fused [attention; classes] weights
    # b_ref:      (2*C_out_pad, 1)     fused biases (f32)
    # pooled_ref: (Bb, C_out, 1)       f32
    # att_ref:    (Bb, C_out, T)       out_dtype
    # cls_ref:    (Bb, C_out, T)       out_dtype
    bb = x_ref.shape[0]
    mm_dtype = jnp.dtype(matmul_dtype)

    def body(b, carry):
        xb = x_ref[b]                                            # (C_in, T) f32
        if mm_dtype != x_ref.dtype:
            xb = xb.astype(mm_dtype)                             # in-kernel cast (VPU)

        # Fused 1x1 convs: one MXU matmul, f32 accumulation, then bias.
        fused = jnp.dot(w_ref[...], xb,
                        preferred_element_type=jnp.float32)      # (2*C_out_pad, T)
        fused = fused + b_ref[...]

        # Both slice offsets (0 and c_out_pad) are multiples of 8 -> aligned.
        att_logits = fused[:c_out_pad, :]                        # (C_out_pad, T)
        cls = fused[c_out_pad:, :]                               # (C_out_pad, T)

        # tanh + softmax over time (lane axis == PyTorch dim=-1 in NCW layout).
        # tanh is bounded to [-1, 1], so exp needs no max-shift.
        att = jnp.tanh(att_logits)
        e = jnp.exp(att)
        denom = jnp.sum(e, axis=-1, keepdims=True)
        if approx_reciprocal:
            norm_att = e * pl.reciprocal(denom, approx=True)
        else:
            norm_att = e / denom

        # Drop the padded rows before the (cheaper) elementwise tail + stores.
        norm_att = norm_att[:c_out, :]                           # (C_out, T)
        cls = cls[:c_out, :]                                     # (C_out, T)
        if activation == "sigmoid":
            cls = jax.nn.sigmoid(cls)
        # activation == 'linear' -> identity

        pooled_ref[b] = jnp.sum(norm_att * cls, axis=-1, keepdims=True)
        att_ref[b] = norm_att.astype(att_ref.dtype)
        cls_ref[b] = cls.astype(cls_ref.dtype)
        return carry

    if bb <= 2:
        # Small static unroll is fine (live ranges bounded, LLO sees everything).
        for b in range(bb):
            body(b, 0)
    else:
        # fori_loop bounds live ranges per iteration -> predictable VMEM use.
        lax.fori_loop(0, bb, body, 0)


def _vmem_capacity_bytes():
    """Physical VMEM per TensorCore (64 MiB v7x, 128 MiB v5e/v6e)."""
    try:
        return int(pltpu.get_tpu_info().vmem_capacity_bytes)
    except Exception:
        return 64 << 20   # conservative fallback (v7x)


def _choose_batch_block(B, C_in, C_out, C_out_pad, T, out_itemsize,
                        vmem_budget_bytes):
    """Pick batch-block size Bb: as large as the VMEM budget allows, but keep
    >=4 grid steps (>=2 per v7x TensorCore) when B allows, and divide B."""
    per_b = 2 * (C_in * T * 4                       # x block (f32, double-buffered)
                 + 2 * C_out * T * out_itemsize     # att + cls blocks
                 + C_out * 4)                       # pooled block
    fixed = (2 * (2 * C_out_pad * (C_in * 4 + 4))   # weights + biases (2x buffered)
             + 6 * C_out_pad * T * 4)               # f32 temporaries of one live iter
    cap_mem = max(1, (vmem_budget_bytes - fixed) // max(per_b, 1))
    cap_par = max(1, B // 4)                        # >=4 grid steps when possible
    cap = max(1, min(int(cap_mem), cap_par, B))
    bb = 1
    for d in range(1, cap + 1):
        if B % d == 0:
            bb = d
    return bb


def attention_head_forward(x_nct, w_att, b_att, w_cls, b_cls,
                           activation="linear",
                           matmul_dtype=jnp.float32,
                           out_dtype=jnp.float32,
                           approx_reciprocal=False):
    """x_nct: (B, C_in, T) float32 (PyTorch NCW layout, consumed as-is).
    w_att/w_cls: (C_out, C_in, 1) Conv1d weights; b_att/b_cls: (C_out,).
    Returns (pooled (B, C_out) f32, norm_att (B, C_out, T), classes (B, C_out, T))."""
    B, C_in, T = x_nct.shape
    C_out = w_att.shape[0]
    c_out_pad = ((C_out + 7) // 8) * 8              # sublane-align each weight half
    w_itemsize = jnp.dtype(matmul_dtype).itemsize
    out_itemsize = jnp.dtype(out_dtype).itemsize

    # Weight prep: pad each half to c_out_pad rows, then fuse along out-channels.
    wa, wc = w_att[:, :, 0], w_cls[:, :, 0]
    ba, bc = b_att, b_cls
    pad = c_out_pad - C_out
    if pad:
        wa = jnp.pad(wa, ((0, pad), (0, 0)))
        wc = jnp.pad(wc, ((0, pad), (0, 0)))
        ba = jnp.pad(ba, (0, pad))
        bc = jnp.pad(bc, (0, pad))
    w_fused = jnp.concatenate([wa, wc], axis=0).astype(matmul_dtype)   # (2*Cp, C_in)
    b_fused = jnp.concatenate([ba, bc], axis=0).reshape(
        2 * c_out_pad, 1).astype(jnp.float32)                          # (2*Cp, 1)

    # Generation-aware budgeting (v7x: 64 MiB/TC; v5e/v6e: 128 MiB).
    vmem_cap = _vmem_capacity_bytes()
    vmem_budget = min(32 << 20, vmem_cap // 4)
    bb = _choose_batch_block(B, C_in, C_out, c_out_pad, T, out_itemsize,
                             vmem_budget)
    grid = (B // bb,)

    x_block_bytes = bb * C_in * T * 4
    out_block_bytes = bb * (2 * C_out * T * out_itemsize + C_out * 4)
    weight_bytes = 2 * c_out_pad * (C_in * w_itemsize + 4)
    temp_bytes = 6 * c_out_pad * T * 4 * min(bb, 2)
    vmem_needed = 2 * (x_block_bytes + out_block_bytes + weight_bytes) + temp_bytes
    vmem_limit = int(min(int(0.9 * vmem_cap),
                         max(16 << 20, 2 * vmem_needed)))

    flops = 2 * B * T * C_in * (2 * c_out_pad) + 6 * B * T * C_out
    transcendentals = B * T * (2 * c_out_pad
                               + (C_out if activation == "sigmoid" else 0))
    bytes_accessed = (B * C_in * T * 4
                      + weight_bytes
                      + B * (2 * C_out * T * out_itemsize + C_out * 4))

    kernel = partial(_attention_head_kernel,
                     c_out=C_out, c_out_pad=c_out_pad, activation=activation,
                     matmul_dtype=matmul_dtype,
                     approx_reciprocal=approx_reciprocal)

    pooled, att, cls = pl.pallas_call(
        kernel,
        grid=grid,
        in_specs=[
            pl.BlockSpec((bb, C_in, T), lambda b: (b, 0, 0)),
            pl.BlockSpec((2 * c_out_pad, C_in), lambda b: (0, 0)),
            pl.BlockSpec((2 * c_out_pad, 1), lambda b: (0, 0)),
        ],
        out_specs=[
            pl.BlockSpec((bb, C_out, 1), lambda b: (b, 0, 0)),
            pl.BlockSpec((bb, C_out, T), lambda b: (b, 0, 0)),
            pl.BlockSpec((bb, C_out, T), lambda b: (b, 0, 0)),
        ],
        out_shape=[
            jax.ShapeDtypeStruct((B, C_out, 1), jnp.float32),
            jax.ShapeDtypeStruct((B, C_out, T), out_dtype),
            jax.ShapeDtypeStruct((B, C_out, T), out_dtype),
        ],
        compiler_params=pltpu.CompilerParams(
            dimension_semantics=("parallel",),
            vmem_limit_bytes=vmem_limit),
        cost_estimate=pl.CostEstimate(
            flops=flops, transcendentals=transcendentals,
            bytes_accessed=bytes_accessed),
    )(x_nct, w_fused, b_fused)

    # Outputs are already in the PyTorch layout; trailing-1 squeeze is a
    # contiguous (metadata-only) reshape.
    return pooled[:, :, 0], att, cls


def _reference_forward(x_nct, w_att, b_att, w_cls, b_cls, activation="linear",
                       matmul_dtype=jnp.float32):
    """Pure-JAX reference matching the PyTorch forward semantics.
    matmul_dtype optionally quantizes matmul inputs the same way the kernel does."""
    xq = x_nct.astype(matmul_dtype).astype(jnp.float32)
    wa = w_att[:, :, 0].astype(matmul_dtype).astype(jnp.float32)
    wc = w_cls[:, :, 0].astype(matmul_dtype).astype(jnp.float32)
    att_logits = jnp.einsum("bct,oc->bot", xq, wa) + b_att[None, :, None]
    norm_att = jax.nn.softmax(jnp.tanh(att_logits), axis=-1)
    cls = jnp.einsum("bct,oc->bot", xq, wc) + b_cls[None, :, None]
    if activation == "sigmoid":
        cls = jax.nn.sigmoid(cls)
    pooled = jnp.sum(norm_att * cls, axis=2)
    return pooled, norm_att, cls


if __name__ == "__main__":
    B, C_in, C_out, T = 2, 8, 4, 16

    key = jax.random.PRNGKey(0)
    kx, kwa, kwc = jax.random.split(key, 3)

    x = jax.random.normal(kx, (B, C_in, T), dtype=jnp.float32)

    # Deterministic init mimicking init_layer (Xavier-uniform weights, zero bias),
    # Conv1d kernel shape (out, in, 1).
    lim = (6.0 / (C_in + C_out)) ** 0.5
    w_att = jax.random.uniform(kwa, (C_out, C_in, 1), minval=-lim, maxval=lim,
                               dtype=jnp.float32)
    w_cls = jax.random.uniform(kwc, (C_out, C_in, 1), minval=-lim, maxval=lim,
                               dtype=jnp.float32)
    b_att = jnp.zeros((C_out,), dtype=jnp.float32)
    b_cls = jnp.zeros((C_out,), dtype=jnp.float32)

    # 1) Accuracy-first path (defaults): f32 matmul, f32 outputs, exact softmax
    #    reciprocal, 'linear' activation.
    out_f32 = attention_head_forward(x, w_att, b_att, w_cls, b_cls,
                                     activation="linear")
    jax.block_until_ready(out_f32)
    ref_f32 = _reference_forward(x, w_att, b_att, w_cls, b_cls,
                                 activation="linear")
    for got, want in zip(out_f32, ref_f32):
        assert jnp.allclose(jnp.asarray(got, jnp.float32), want,
                            atol=1e-3, rtol=1e-3)

    # 2) Perf path: bf16 matmul (MXU-friendly, in-kernel cast), bf16 att/cls
    #    outputs (halved writeback), approx softmax reciprocal, 'sigmoid'
    #    activation exercising the nonlinear_transform branch.
    out_bf16 = attention_head_forward(x, w_att, b_att, w_cls, b_cls,
                                      activation="sigmoid",
                                      matmul_dtype=jnp.bfloat16,
                                      out_dtype=jnp.bfloat16,
                                      approx_reciprocal=True)
    jax.block_until_ready(out_bf16)
    ref_bf16 = _reference_forward(x, w_att, b_att, w_cls, b_cls,
                                  activation="sigmoid",
                                  matmul_dtype=jnp.bfloat16)
    for got, want in zip(out_bf16, ref_bf16):
        assert jnp.allclose(jnp.asarray(got, jnp.float32), want,
                            atol=1e-2, rtol=1e-2)

    print("KERNEL_OK")
</pallas_src>

<mosaic_0001>
module attributes {stable_mosaic.version = 11 : i64} {
  func.func @_attention_head_kernel(%arg0: i32, %arg1: memref<1x8x16xf32, #tpu.memory_space<vmem>>, %arg2: memref<16x8xf32, #tpu.memory_space<vmem>>, %arg3: memref<16x1xf32, #tpu.memory_space<vmem>>, %arg4: memref<1x4x1xf32, #tpu.memory_space<vmem>>, %arg5: memref<1x4x16xf32, #tpu.memory_space<vmem>>, %arg6: memref<1x4x16xf32, #tpu.memory_space<vmem>>) attributes {dimension_semantics = [#tpu.dimension_semantics<parallel>], iteration_bounds = array<i64: 2>, scalar_prefetch = 0 : i64, scratch_operands = 0 : i64, tpu.core_type = #tpu.core_type<tc>, window_params = [{transform_indices = @transform_0, window_bounds = array<i64: 1, 8, 16>}, {pipeline_mode = #tpu.pipeline_mode<synchronous>, transform_indices = @transform_1, window_bounds = array<i64: 16, 8>}, {pipeline_mode = #tpu.pipeline_mode<synchronous>, transform_indices = @transform_2, window_bounds = array<i64: 16, 1>}, {transform_indices = @transform_3, window_bounds = array<i64: 1, 4, 1>}, {transform_indices = @transform_4, window_bounds = array<i64: 1, 4, 16>}, {transform_indices = @transform_5, window_bounds = array<i64: 1, 4, 16>}]} {
    %c0 = arith.constant 0 : index
    %c0_0 = arith.constant 0 : index
    %c0_1 = arith.constant 0 : index
    %0 = vector.load %arg1[%c0, %c0_0, %c0_1] : memref<1x8x16xf32, #tpu.memory_space<vmem>>, vector<1x8x16xf32>
    %1 = vector.shape_cast %0 : vector<1x8x16xf32> to vector<8x16xf32>
    %c0_2 = arith.constant 0 : index
    %c0_3 = arith.constant 0 : index
    %2 = vector.load %arg2[%c0_2, %c0_3] : memref<16x8xf32, #tpu.memory_space<vmem>>, vector<16x8xf32>
    %cst = arith.constant dense<0.000000e+00> : vector<16x16xf32>
    %3 = tpu.matmul %2, %1, %cst {dimension_numbers = #tpu.dot_dimension_numbers<[1], [0], [0], [1], [0, 0, 1, 1], [], []>} : vector<16x8xf32>, vector<8x16xf32>, vector<16x16xf32> -> vector<16x16xf32>
    %c0_4 = arith.constant 0 : index
    %c0_5 = arith.constant 0 : index
    %4 = vector.load %arg3[%c0_4, %c0_5] : memref<16x1xf32, #tpu.memory_space<vmem>>, vector<16x1xf32>
    %5 = vector.broadcast %4 : vector<16x1xf32> to vector<16x16xf32>
    %6 = arith.addf %3, %5 : vector<16x16xf32>
    %7 = vector.extract_strided_slice %6 {offsets = [0, 0], sizes = [8, 16], strides = [1, 1]} : vector<16x16xf32> to vector<8x16xf32>
    %8 = vector.extract_strided_slice %6 {offsets = [8, 0], sizes = [8, 16], strides = [1, 1]} : vector<16x16xf32> to vector<8x16xf32>
    %9 = math.tanh %7 : vector<8x16xf32>
    %10 = math.exp %9 : vector<8x16xf32>
    %cst_6 = arith.constant dense<0.000000e+00> : vector<8xf32>
    %11 = vector.multi_reduction <add>, %10, %cst_6 [1] : vector<8x16xf32> to vector<8xf32>
    %12 = vector.shape_cast %11 : vector<8xf32> to vector<8x1xf32>
    %13 = vector.broadcast %12 : vector<8x1xf32> to vector<8x16xf32>
    %14 = arith.divf %10, %13 : vector<8x16xf32>
    %15 = vector.extract_strided_slice %14 {offsets = [0, 0], sizes = [4, 16], strides = [1, 1]} : vector<8x16xf32> to vector<4x16xf32>
    %16 = vector.extract_strided_slice %8 {offsets = [0, 0], sizes = [4, 16], strides = [1, 1]} : vector<8x16xf32> to vector<4x16xf32>
    %17 = arith.mulf %15, %16 : vector<4x16xf32>
    %cst_7 = arith.constant dense<0.000000e+00> : vector<4xf32>
    %18 = vector.multi_reduction <add>, %17, %cst_7 [1] : vector<4x16xf32> to vector<4xf32>
    %19 = vector.shape_cast %18 : vector<4xf32> to vector<4x1xf32>
    %c0_8 = arith.constant 0 : index
    %c0_9 = arith.constant 0 : index
    %c0_10 = arith.constant 0 : index
    %20 = vector.load %arg4[%c0_8, %c0_9, %c0_10] : memref<1x4x1xf32, #tpu.memory_space<vmem>>, vector<1x4x1xf32>
    %21 = vector.shape_cast %20 : vector<1x4x1xf32> to vector<4x1xf32>
    %22 = vector.shape_cast %19 : vector<4x1xf32> to vector<1x4x1xf32>
    tpu.vector_store %arg4[%c0_8, %c0_9, %c0_10], %22 {strides = array<i32>} : memref<1x4x1xf32, #tpu.memory_space<vmem>>, vector<1x4x1xf32>,
    %c0_11 = arith.constant 0 : index
    %c0_12 = arith.constant 0 : index
    %c0_13 = arith.constant 0 : index
    %23 = vector.load %arg5[%c0_11, %c0_12, %c0_13] : memref<1x4x16xf32, #tpu.memory_space<vmem>>, vector<1x4x16xf32>
    %24 = vector.shape_cast %23 : vector<1x4x16xf32> to vector<4x16xf32>
    %25 = vector.shape_cast %15 : vector<4x16xf32> to vector<1x4x16xf32>
    tpu.vector_store %arg5[%c0_11, %c0_12, %c0_13], %25 {strides = array<i32>} : memref<1x4x16xf32, #tpu.memory_space<vmem>>, vector<1x4x16xf32>,
    %c0_14 = arith.constant 0 : index
    %c0_15 = arith.constant 0 : index
    %c0_16 = arith.constant 0 : index
    %26 = vector.load %arg6[%c0_14, %c0_15, %c0_16] : memref<1x4x16xf32, #tpu.memory_space<vmem>>, vector<1x4x16xf32>
    %27 = vector.shape_cast %26 : vector<1x4x16xf32> to vector<4x16xf32>
    %28 = vector.shape_cast %16 : vector<4x16xf32> to vector<1x4x16xf32>
    tpu.vector_store %arg6[%c0_14, %c0_15, %c0_16], %28 {strides = array<i32>} : memref<1x4x16xf32, #tpu.memory_space<vmem>>, vector<1x4x16xf32>,
    return
  }
  func.func @transform_0(%arg0: i32) -> (i32, i32, i32) {
    %c0_i32 = arith.constant 0 : i32
    %c0_i32_0 = arith.constant 0 : i32
    %c0_i32_1 = arith.constant 0 : i32
    return %arg0, %c0_i32, %c0_i32_0 : i32, i32, i32
  }
  func.func @transform_1(%arg0: i32) -> (i32, i32) {
    %c0_i32 = arith.constant 0 : i32
    %c0_i32_0 = arith.constant 0 : i32
    %c0_i32_1 = arith.constant 0 : i32
    return %c0_i32, %c0_i32_0 : i32, i32
  }
  func.func @transform_2(%arg0: i32) -> (i32, i32) {
    %c0_i32 = arith.constant 0 : i32
    %c0_i32_0 = arith.constant 0 : i32
    %c0_i32_1 = arith.constant 0 : i32
    return %c0_i32, %c0_i32_0 : i32, i32
  }
  func.func @transform_3(%arg0: i32) -> (i32, i32, i32) {
    %c0_i32 = arith.constant 0 : i32
    %c0_i32_0 = arith.constant 0 : i32
    %c0_i32_1 = arith.constant 0 : i32
    return %arg0, %c0_i32, %c0_i32_0 : i32, i32, i32
  }
  func.func @transform_4(%arg0: i32) -> (i32, i32, i32) {
    %c0_i32 = arith.constant 0 : i32
    %c0_i32_0 = arith.constant 0 : i32
    %c0_i32_1 = arith.constant 0 : i32
    return %arg0, %c0_i32, %c0_i32_0 : i32, i32, i32
  }
  func.func @transform_5(%arg0: i32) -> (i32, i32, i32) {
    %c0_i32 = arith.constant 0 : i32
    %c0_i32_0 = arith.constant 0 : i32
    %c0_i32_1 = arith.constant 0 : i32
    return %arg0, %c0_i32, %c0_i32_0 : i32, i32, i32
  }
}

</mosaic_0001>

<llo_original>
// kernel: tpu_custom_call.1
$region0: #{tpu_custom_call.1}
  #allocation0 [shape = 'u32[]', space=smem, size = 0x4, offset = 0x4, fixed_abs, tag = 'smem constant byte address 0x4 - core index']
  #allocation1 [shape = 'u32[72,128]{1,0:T(1,128)}', space=vmem, size = 0x9000, scoped, tag = 'internal scratch']
  %s0 = inlined_call_operand.vmem [shape: f32[2,8,16], index: 0, kind: input, shape index: {}]
  %s1 = inlined_call_operand.vmem [shape: f32[16,8], index: 1, kind: input, shape index: {}]
  %s2 = inlined_call_operand.vmem [shape: f32[16,1], index: 2, kind: input, shape index: {}]
  %s3 = inlined_call_operand.vmem [shape: f32[2,4,1], index: 3, kind: output, shape index: {0}]
  %s4 = inlined_call_operand.hbm [shape: f32[2,4,16], index: 4, kind: output, shape index: {1}]
  %s5 = inlined_call_operand.hbm [shape: f32[2,4,16], index: 5, kind: output, shape index: {2}]
  %6 = xla_tuple %s3, %s4, %s5
  %s7 = sld [smem:[#allocation0]]
  $region61: #{tpu_custom_call.1} parent=0
    _
  %s9 = ssub.s32 1, %s7
  %s10 = scalar_select 0, %s9, %s7
  $region1: #{tpu_custom_call.1} parent=0
    #allocation2 [shape = 'u8[4096]{0}', space=vmem, size = 0x1000, scoped, tag = 'output window, operand 1']
    #allocation3 [shape = 's32[2]{0}', space=sflag, size = 0x8, scoped, tag = 'scoped memory for tpu_custom_call.1']
    #allocation4 [shape = 'u8[4096]{0}', space=vmem, size = 0x1000, scoped, tag = 'output window, operand 2']
    #allocation5 [shape = 's32[2]{0}', space=sflag, size = 0x8, scoped, tag = 'scoped memory for tpu_custom_call.1']
    %11 = vsyncpa [#allocation3], 0
    %s12 = scalar_lea.sflag [#allocation3], 1
    %13 = vsyncpa %s12, 0
    %14 = vsyncpa [#allocation5], 0
    %s15 = scalar_lea.sflag [#allocation5], 1
    %16 = vsyncpa %s15, 0
    loop: start=0, step=1, limit=4
    $region2: #{tpu_custom_call.1} parent=1 // loop_pre_header
      _
    $region3: #{tpu_custom_call.1} parent=1 // loop_header
      %s18 = sphi 0, %s22
      %p19 = scmp.ge.s32.totalorder %s18, 4
      %s28 = sphi 0, %s30
      %s31 = sphi 0, %s28
      %s32 = sphi 0, %s31
      %s48 = sphi 0, %s32
      %s52 = sphi 0, %s52
      %s54 = sphi 0, %s52
      %s55 = sphi 0, %s54
      %s69 = sphi 0, %s55
      %s73 = sphi 0, %s73
      %s75 = sphi 0, %s73
      %s76 = sphi 0, %s75
      %s90 = sphi 0, %s76
      %s96 = sphi 0, %s98
      %s99 = sphi 0, %s96
      %s100 = sphi 0, %s99
      %s116 = sphi 0, %s100
      %s122 = sphi 0, %s124
      %s125 = sphi 0, %s122
      %s126 = sphi 0, %s125
      %s142 = sphi 0, %s126
      %s148 = sphi 0, %s150
      %s151 = sphi 0, %s148
      %s152 = sphi 0, %s151
      %s168 = sphi 0, %s152
    $region4: #{tpu_custom_call.1} parent=1 // loop_header_branch
      %21 = sbr.rel (%p19) target = $region8
    $region5: #{tpu_custom_call.1} parent=1 // loop_body
      %s23 = ssub.s32 %s18, 1
      %s24 = ssub.s32 %s18, 2
      %s25 = sadd.s32 %s18, 1
      %s26 = ssub.s32 %s18, %s25
      %p27 = scmp.eq.s32.totalorder %s26, 0
      %s29 = sadd.s32 %s28, 1
      %s30 = scalar_select %p27, %s28, %s29
      %p33 = pneg %p27
      %p34 = scmp.eq.s32.totalorder %s18, 1
      %p35 = por %p33, %p34
      %p36 = scmp.ne.s32.totalorder %s28, %s31
      %p37 = scmp.eq.s32.totalorder %s18, 0
      %p38 = por %p36, %p37
      %p39 = scmp.ne.s32.totalorder %s28, %s31
      %p40 = scmp.eq.s32.totalorder %s23, 1
      %p41 = por %p39, %p40
      %p42 = scmp.ne.s32.totalorder %s31, %s32
      %p43 = scmp.eq.s32.totalorder %s23, 0
      %p44 = por %p42, %p43
      %p45 = scmp.ne.s32.totalorder %s31, %s32
      %p46 = scmp.eq.s32.totalorder %s24, 1
      %p47 = por %p45, %p46
      %p49 = scmp.ne.s32.totalorder %s32, %s48
      %p50 = scmp.eq.s32.totalorder %s24, 0
      %p51 = por %p49, %p50
      %s53 = sadd.s32 %s52, 1
      %p56 = scmp.eq.s32.totalorder %s18, 1
      %p57 = scmp.ne.s32.totalorder %s52, %s54
      %p58 = scmp.eq.s32.totalorder %s18, 0
      %p59 = por %p57, %p58
      %p60 = scmp.ne.s32.totalorder %s52, %s54
      %p61 = scmp.eq.s32.totalorder %s23, 1
      %p62 = por %p60, %p61
      %p63 = scmp.ne.s32.totalorder %s54, %s55
      %p64 = scmp.eq.s32.totalorder %s23, 0
      %p65 = por %p63, %p64
      %p66 = scmp.ne.s32.totalorder %s54, %s55
      %p67 = scmp.eq.s32.totalorder %s24, 1
      %p68 = por %p66, %p67
      %p70 = scmp.ne.s32.totalorder %s55, %s69
      %p71 = scmp.eq.s32.totalorder %s24, 0
      %p72 = por %p70, %p71
      %s74 = sadd.s32 %s73, 1
      %p77 = scmp.eq.s32.totalorder %s18, 1
      %p78 = scmp.ne.s32.totalorder %s73, %s75
      %p79 = scmp.eq.s32.totalorder %s18, 0
      %p80 = por %p78, %p79
      %p81 = scmp.ne.s32.totalorder %s73, %s75
      %p82 = scmp.eq.s32.totalorder %s23, 1
      %p83 = por %p81, %p82
      %p84 = scmp.ne.s32.totalorder %s75, %s76
      %p85 = scmp.eq.s32.totalorder %s23, 0
      %p86 = por %p84, %p85
      %p87 = scmp.ne.s32.totalorder %s75, %s76
      %p88 = scmp.eq.s32.totalorder %s24, 1
      %p89 = por %p87, %p88
      %p91 = scmp.ne.s32.totalorder %s76, %s90
      %p92 = scmp.eq.s32.totalorder %s24, 0
      %p93 = por %p91, %p92
      %s94 = ssub.s32 %s18, %s25
      %p95 = scmp.eq.s32.totalorder %s94, 0
      %s97 = sadd.s32 %s96, 1
      %s98 = scalar_select %p95, %s96, %s97
      %p101 = pneg %p95
      %p102 = scmp.eq.s32.totalorder %s18, 1
      %p103 = por %p101, %p102
      %p104 = scmp.ne.s32.totalorder %s96, %s99
      %p105 = scmp.eq.s32.totalorder %s18, 0
      %p106 = por %p104, %p105
      %p107 = scmp.ne.s32.totalorder %s96, %s99
      %p108 = scmp.eq.s32.totalorder %s23, 1
      %p109 = por %p107, %p108
      %p110 = scmp.ne.s32.totalorder %s99, %s100
      %p111 = scmp.eq.s32.totalorder %s23, 0
      %p112 = por %p110, %p111
      %p113 = scmp.ne.s32.totalorder %s99, %s100
      %p114 = scmp.eq.s32.totalorder %s24, 1
      %p115 = por %p113, %p114
      %p117 = scmp.ne.s32.totalorder %s100, %s116
      %p118 = scmp.eq.s32.totalorder %s24, 0
      %p119 = por %p117, %p118
      %s120 = ssub.s32 %s18, %s25
      %p121 = scmp.eq.s32.totalorder %s120, 0
      %s123 = sadd.s32 %s122, 1
      %s124 = scalar_select %p121, %s122, %s123
      %p127 = pneg %p121
      %p128 = scmp.eq.s32.totalorder %s18, 1
      %p129 = por %p127, %p128
      %p130 = scmp.ne.s32.totalorder %s122, %s125
      %p131 = scmp.eq.s32.totalorder %s18, 0
      %p132 = por %p130, %p131
      %p133 = scmp.ne.s32.totalorder %s122, %s125
      %p134 = scmp.eq.s32.totalorder %s23, 1
      %p135 = por %p133, %p134
      %p136 = scmp.ne.s32.totalorder %s125, %s126
      %p137 = scmp.eq.s32.totalorder %s23, 0
      %p138 = por %p136, %p137
      %p139 = scmp.ne.s32.totalorder %s125, %s126
      %p140 = scmp.eq.s32.totalorder %s24, 1
      %p141 = por %p139, %p140
      %p143 = scmp.ne.s32.totalorder %s126, %s142
      %p144 = scmp.eq.s32.totalorder %s24, 0
      %p145 = por %p143, %p144
      %s146 = ssub.s32 %s18, %s25
      %p147 = scmp.eq.s32.totalorder %s146, 0
      %s149 = sadd.s32 %s148, 1
      %s150 = scalar_select %p147, %s148, %s149
      %p153 = pneg %p147
      %p154 = scmp.eq.s32.totalorder %s18, 1
      %p155 = por %p153, %p154
      %p156 = scmp.ne.s32.totalorder %s148, %s151
      %p157 = scmp.eq.s32.totalorder %s18, 0
      %p158 = por %p156, %p157
      %p159 = scmp.ne.s32.totalorder %s148, %s151
      %p160 = scmp.eq.s32.totalorder %s23, 1
      %p161 = por %p159, %p160
      %p162 = scmp.ne.s32.totalorder %s151, %s152
      %p163 = scmp.eq.s32.totalorder %s23, 0
      %p164 = por %p162, %p163
      %p165 = scmp.ne.s32.totalorder %s151, %s152
      %p166 = scmp.eq.s32.totalorder %s24, 1
      %p167 = por %p165, %p166
      %p169 = scmp.ne.s32.totalorder %s152, %s168
      %p170 = scmp.eq.s32.totalorder %s24, 0
      %p171 = por %p169, %p170
      %p172 = scmp.le.s32.totalorder 1, %s18
      %p173 = scmp.lt.s32.totalorder %s18, 3
      %p174 = pnand %p172, %p173
      %p175 = pneg %p174
      // Predicated region
      $region9: #{tpu_custom_call.1} parent=5 // pred_check
        _
      $region10: #{tpu_custom_call.1} parent=5 // pred_check_branch
        %177 = sbr.rel (%p174) target = $region12
      $region11: #{tpu_custom_call.1} parent=5 // pred_region
        %s178 = ssub.s32 %s18, 1
        // Predicated region
        $region13: #{tpu_custom_call.1} parent=11 // pred_check
          %p179 = pneg %p65
        $region14: #{tpu_custom_call.1} parent=11 // pred_check_branch
          %181 = sbr.rel (%p179) target = $region16
        $region15: #{tpu_custom_call.1} parent=11 // pred_region
          _
        $region16: #{tpu_custom_call.1} parent=11 // pred_fallthru
          _
        // Predicated region
        $region17: #{tpu_custom_call.1} parent=11 // pred_check
          %p182 = pneg %p86
        $region18: #{tpu_custom_call.1} parent=11 // pred_check_branch
          %184 = sbr.rel (%p182) target = $region20
        $region19: #{tpu_custom_call.1} parent=11 // pred_region
          _
        $region20: #{tpu_custom_call.1} parent=11 // pred_fallthru
          _
      $region12: #{tpu_custom_call.1} parent=5 // pred_fallthru
        _
      %p185 = scmp.lt.s32.totalorder %s18, 2
      // Predicated region
      $region21: #{tpu_custom_call.1} parent=5 // pred_check
        %p186 = pneg %p185
      $region22: #{tpu_custom_call.1} parent=5 // pred_check_branch
        %188 = sbr.rel (%p186) target = $region24
      $region23: #{tpu_custom_call.1} parent=5 // pred_region
        // Predicated region
        $region25: #{tpu_custom_call.1} parent=23 // pred_check
          %p189 = pneg %p38
        $region26: #{tpu_custom_call.1} parent=23 // pred_check_branch
          %191 = sbr.rel (%p189) target = $region28
        $region27: #{tpu_custom_call.1} parent=23 // pred_region
          %p192 = scmp.lt.s32.totalorder %s18, 1
          %s193 = scalar_select %p192, %s18, 1
          %s194 = smul.addr %s193, 8
          %s195 = scalar_lea.vmem %s0, %s194
        $region28: #{tpu_custom_call.1} parent=23 // pred_fallthru
          _
      $region24: #{tpu_custom_call.1} parent=5 // pred_fallthru
        _
      %p196 = scmp.le.s32.totalorder 1, %s18
      %p197 = scmp.lt.s32.totalorder %s18, 3
      %p198 = pnand %p196, %p197
      %p199 = pneg %p198
      // Predicated region
      $region29: #{tpu_custom_call.1} parent=5 // pred_check
        _
      $region30: #{tpu_custom_call.1} parent=5 // pred_check_branch
        %201 = sbr.rel (%p198) target = $region32
      $region31: #{tpu_custom_call.1} parent=5 // pred_region
        %s202 = ssub.s32 %s18, 1
        %p203 = scmp.lt.s32.totalorder %s23, 1
        %s204 = scalar_select %p203, %s23, 1
        %s205 = smul.addr %s204, 8
        %s206 = scalar_lea.vmem %s0, %s205
        %p207 = pneg %p44
        %p208 = pneg %p41
        %p209 = pneg %p65
        %p210 = pneg %p62
        %p211 = pneg %p86
        %p212 = pneg %p83
        %p213 = pneg %p112
        %p214 = pneg %p109
        %p215 = scmp.lt.s32.totalorder %s23, 1
        %s216 = scalar_select %p215, %s23, 1
        %s217 = smul.addr %s216, 4
        %s218 = scalar_lea.vmem %s3, %s217
        %p219 = pneg %p138
        %p220 = pneg %p135
        %s221 = sand.u32 %s125, 1
        %s222 = scalar_lea.sflag [#allocation3], %s221
        %s223 = sand.u32 %s125, 1
        %s224 = smul.addr %s223, 4
        %s225 = scalar_lea.vmem [#allocation2], %s224
        %p226 = pneg %p164
        %p227 = pneg %p161
        %s228 = sand.u32 %s151, 1
        %s229 = scalar_lea.sflag [#allocation5], %s228
        %s230 = sand.u32 %s151, 1
        %s231 = smul.addr %s230, 4
        %s232 = scalar_lea.vmem [#allocation4], %s231
        %p233 = scmp.lt.s32.totalorder %s23, 1
        %s234 = scalar_select %p233, %s23, 1
        %s235 = smul.addr %s234, 8
        %s236 = scalar_lea.vmem %s0, %s235
        %p237 = scmp.lt.s32.totalorder %s23, 1
        %s238 = scalar_select %p237, %s23, 1
        %s239 = smul.addr %s238, 4
        %s240 = scalar_lea.vmem %s3, %s239
        %v241 = vld [vmem:[%s236] sm:$0xff]
        %v242 = vld [vmem:[%s1] sm:$0xff]
        %v243 = vld [vmem:[%s1 + $0x8] sm:$0xff]
        %v244 = vld [vmem:[%s2] sm:$0xff]
        %v245 = vld [vmem:[%s2 + $0x8] sm:$0xff]
        %247 = vset.pattern.permute.xlu0 0
        %248 = vperm.xlu0 %247, %v244
        %v249 = vpop.permute.xlu0 %248
        %252 = vset.pattern.permute.xlu0 0
        %253 = vperm.xlu0 %252, %v245
        %v254 = vpop.permute.xlu0 %253
        %vm256 = vcmask 64512
        %v258 = vsel %vm256, %v242, 0
        %v261 = vsel %vm256, %v243, 0
        %263 = vmatpush.msra.mxu0 0.0
        %264 = vmatpush.msra.mxu0 0.0
        %265 = vmatpush.msra.mxu0 0.0
        %266 = vmatpush.msra.mxu0 0.0
        %267 = vmatpush.msra.mxu0 0.0
        %268 = vmatpush.msra.mxu0 0.0
        %269 = vmatpush.msra.mxu0 0.0
        %270 = vmatpush.msra.mxu0 0.0
        %271 = vmatpush.msra.mxu0 0.0
        %272 = vmatpush.msra.mxu0 0.0
        %273 = vmatpush.msra.mxu0 0.0
        %274 = vmatpush.msra.mxu0 0.0
        %275 = vmatpush.msra.mxu0 0.0
        %276 = vmatpush.msra.mxu0 0.0
        %277 = vmatpush.msra.mxu0 0.0
        %278 = vmatpush.msra.mxu0 %v241
        %279 = vmatmul.f32.gmra.mxu0 %v258
        %v280 = vpop.f32.mrf.mxu0
        %v281 = vadd.f32 %v249, %v280
        %282 = vmatmul.f32.gmra.mxu0 %v261
        %v283 = vpop.f32.mrf.mxu0
        %v284 = vadd.f32 %v254, %v283
        %285 = vdwg.mxu0
        %v286 = vtanh.pop %v281
        %v287 = vmul.f32 %v286, 1.442695
        %v288 = vpow.pop %v287
        %vm289 = vcmask 130048
        %v290 = vsel %vm289, %v288, 0.0
        %291 = vadd.xlane.f32.xlu0 %v290
        %v292 = vpop.xlane.xlu0 %291
        %v293 = vrcp.pop %v292
        %v294 = vmul.f32 %v292, %v293
        %v295 = vsub.f32 1.0, %v294
        %v296 = vmul.f32 %v293, %v295
        %v297 = vadd.f32 %v293, %v296
        %vm298 = vweird.f32 %v292
        %vm299 = vweird.f32 %v293
        %vm300 = vmor %vm298, %vm299
        %v301 = vsel %vm300, %v293, %v297
        %v302 = vand.u32 2147483647, %v292
        %vm303 = vcmp.eq.f32.partialorder %v302, 8.507059e+37
        %v304 = vand.u32 %v292, 2147483648
        %v305 = vor.u32 1.1754944e-38, %v304
        %v306 = vsel %vm303, %v305, %v301
        %v307 = vmul.f32 %v288, %v306
        %v308 = vmul.f32 %v307, %v284
        %vm309 = vcmask 125952
        %v310 = vsel %vm309, %v308, 0.0
        %311 = vadd.xlane.f32.xlu0 %v310
        %v312 = vpop.xlane.xlu0 %311
        %vm313 = vcmask 3072
        %314 = vst.msk [vmem:[%s240] sm:$0xf] %vm313, %v312
        %315 = vst.msk [vmem:[%s225] sm:$0xf] %vm309, %v307
        %316 = vst.msk [vmem:[%s232] sm:$0xf] %vm309, %v284
        %p317 = scmp.lt.s32.totalorder %s23, 1
        %s318 = scalar_select %p317, %s23, 1
        %s319 = smul.addr %s318, 4
        %s320 = scalar_lea.vmem %s3, %s319
        %s321 = sand.u32 %s125, 1
        %s322 = scalar_lea.sflag [#allocation3], %s321
        %s323 = sand.u32 %s125, 1
        %s324 = smul.addr %s323, 4
        %s325 = scalar_lea.vmem [#allocation2], %s324
        %s326 = sand.u32 %s151, 1
        %s327 = scalar_lea.sflag [#allocation5], %s326
        %s328 = sand.u32 %s151, 1
        %s329 = smul.addr %s328, 4
        %s330 = scalar_lea.vmem [#allocation4], %s329
        // Predicated region
        $region33: #{tpu_custom_call.1} parent=31 // pred_check
          %p331 = pneg %p109
        $region34: #{tpu_custom_call.1} parent=31 // pred_check_branch
          %333 = sbr.rel (%p331) target = $region36
        $region35: #{tpu_custom_call.1} parent=31 // pred_region
          _
        $region36: #{tpu_custom_call.1} parent=31 // pred_fallthru
          _
        // Predicated region
        $region37: #{tpu_custom_call.1} parent=31 // pred_check
          %p334 = pneg %p135
        $region38: #{tpu_custom_call.1} parent=31 // pred_check_branch
          %336 = sbr.rel (%p334) target = $region40
        $region39: #{tpu_custom_call.1} parent=31 // pred_region
          %338 = vsyncadd %s322, 0
          %s339 = smul.addr %s23, 4
          %s340 = scalar_lea.hbm %s4, %s339
          %s342 = sshll.u32 %s325, 4
          %s343 = int_to_ptr.vmem [resolvable:$true] %s342
          %s344 = sshll.u32 %s340, 4
          %s345 = int_to_ptr.hbm [resolvable:$true] %s344
          %347 = dma.vmem_to_hbm [thread:$0]  %s343, 64, %s345, %s322
        $region40: #{tpu_custom_call.1} parent=31 // pred_fallthru
          _
        // Predicated region
        $region41: #{tpu_custom_call.1} parent=31 // pred_check
          %p348 = pneg %p161
        $region42: #{tpu_custom_call.1} parent=31 // pred_check_branch
          %350 = sbr.rel (%p348) target = $region44
        $region43: #{tpu_custom_call.1} parent=31 // pred_region
          %352 = vsyncadd %s327, 0
          %s353 = smul.addr %s23, 4
          %s354 = scalar_lea.hbm %s5, %s353
          %s356 = sshll.u32 %s330, 4
          %s357 = int_to_ptr.vmem [resolvable:$true] %s356
          %s358 = sshll.u32 %s354, 4
          %s359 = int_to_ptr.hbm [resolvable:$true] %s358
          %361 = dma.vmem_to_hbm [thread:$0]  %s357, 64, %s359, %s327
        $region44: #{tpu_custom_call.1} parent=31 // pred_fallthru
          _
      $region32: #{tpu_custom_call.1} parent=5 // pred_fallthru
        _
      %p362 = scmp.le.s32.totalorder 2, %s18
      // Predicated region
      $region45: #{tpu_custom_call.1} parent=5 // pred_check
        %p363 = pneg %p362
      $region46: #{tpu_custom_call.1} parent=5 // pred_check_branch
        %365 = sbr.rel (%p363) target = $region48
      $region47: #{tpu_custom_call.1} parent=5 // pred_region
        %s366 = ssub.s32 %s18, 2
        // Predicated region
        $region49: #{tpu_custom_call.1} parent=47 // pred_check
          %p367 = pneg %p115
        $region50: #{tpu_custom_call.1} parent=47 // pred_check_branch
          %369 = sbr.rel (%p367) target = $region52
        $region51: #{tpu_custom_call.1} parent=47 // pred_region
          %p370 = scmp.lt.s32.totalorder %s24, 1
          %s371 = scalar_select %p370, %s24, 1
          %s372 = smul.addr %s371, 4
          %s373 = scalar_lea.vmem %s3, %s372
        $region52: #{tpu_custom_call.1} parent=47 // pred_fallthru
          _
        // Predicated region
        $region53: #{tpu_custom_call.1} parent=47 // pred_check
          %p374 = pneg %p141
        $region54: #{tpu_custom_call.1} parent=47 // pred_check_branch
          %376 = sbr.rel (%p374) target = $region56
        $region55: #{tpu_custom_call.1} parent=47 // pred_region
          %s377 = sand.u32 %s126, 1
          %s378 = scalar_lea.sflag [#allocation3], %s377
          %s379 = sand.u32 %s126, 1
          %s380 = smul.addr %s379, 4
          %s381 = scalar_lea.vmem [#allocation2], %s380
          %383 = dma.done %s378, 64
        $region56: #{tpu_custom_call.1} parent=47 // pred_fallthru
          _
        // Predicated region
        $region57: #{tpu_custom_call.1} parent=47 // pred_check
          %p384 = pneg %p167
        $region58: #{tpu_custom_call.1} parent=47 // pred_check_branch
          %386 = sbr.rel (%p384) target = $region60
        $region59: #{tpu_custom_call.1} parent=47 // pred_region
          %s387 = sand.u32 %s152, 1
          %s388 = scalar_lea.sflag [#allocation5], %s387
          %s389 = sand.u32 %s152, 1
          %s390 = smul.addr %s389, 4
          %s391 = scalar_lea.vmem [#allocation4], %s390
          %393 = dma.done %s388, 64
        $region60: #{tpu_custom_call.1} parent=47 // pred_fallthru
          _
      $region48: #{tpu_custom_call.1} parent=5 // pred_fallthru
        _
    $region6: #{tpu_custom_call.1} parent=1 // loop_footer
      %s22 = sadd.s32 1, %s18
    $region7: #{tpu_custom_call.1} parent=1 // loop_footer_branch
      %17 = sbr.rel target = $region3
    $region8: #{tpu_custom_call.1} parent=1 // loop_exit
      _
    %394 = vsyncpa [#allocation3], 1
    %s395 = scalar_lea.sflag [#allocation3], 1
    %396 = vsyncpa %s395, 1
    %397 = vsyncpa [#allocation5], 1
    %s398 = scalar_lea.sflag [#allocation5], 1
    %399 = vsyncpa %s398, 1

</llo_original>
